<compile_context>
chip_gen: v5e
topology: v5e:2x2
jax: 0.10.0
libtpu: 0.0.40
codegen_flags: <defaults>
</compile_context>

<pallas_src>
import jax
import jax.numpy as jnp
from jax.experimental import pallas as pl
from jax.experimental.pallas import tpu as pltpu

_LANES = 128
_NEG_PAD = -1e4  # sigmoid(_NEG_PAD) == 0 exactly in f32/bf16; LSE stays finite


def _cdiv(a, b):
    return -(-a // b)


def _round_up(a, b):
    return _cdiv(a, b) * b


def _partial_sums(x, t):
    """x, t: (C, TS, 128) f32 -> per-class, lane-wide partial sums (each (C, 128))."""
    m = jnp.max(x, axis=0)                                     # (TS, 128)
    lse = m + jnp.log(jnp.sum(jnp.exp(x - m[None]), axis=0))   # (TS, 128)
    sig = jax.nn.sigmoid(x)                                    # (C, TS, 128)
    ce_c = jnp.sum(t * (lse[None] - x), axis=1)                # (C, 128)
    inter = jnp.sum(sig * t, axis=1)                           # (C, 128)
    ysum = jnp.sum(t * t, axis=1)                              # (C, 128)
    zsum = jnp.sum(sig * sig, axis=1)                          # (C, 128)
    return ce_c, inter, ysum, zsum


def _dense_kernel(x_ref, t_ref, out_ref):
    # x_ref/t_ref: (1, C, TS, 128) logits / soft targets. out_ref: (1, 1, 4, C, 128).
    ce_c, inter, ysum, zsum = _partial_sums(
        x_ref[0].astype(jnp.float32), t_ref[0].astype(jnp.float32))
    out_ref[0, 0, 0] = ce_c
    out_ref[0, 0, 1] = inter
    out_ref[0, 0, 2] = ysum
    out_ref[0, 0, 3] = zsum


def _labels_kernel(x_ref, lab_ref, out_ref):
    # x_ref: (1, C, TS, 128) logits. lab_ref: (1, TS, 128) integer class labels.
    x = x_ref[0].astype(jnp.float32)
    lab = lab_ref[0]
    n_classes = x.shape[0]
    # Rebuild one-hot targets in-register (saves ~C x of target HBM read traffic).
    t = jnp.stack([(lab == c).astype(jnp.float32) for c in range(n_classes)], axis=0)
    ce_c, inter, ysum, zsum = _partial_sums(x, t)
    out_ref[0, 0, 0] = ce_c
    out_ref[0, 0, 1] = inter
    out_ref[0, 0, 2] = ysum
    out_ref[0, 0, 3] = zsum


def _pick_tile(rows_raw, batch, n_classes, x_itemsize, t_row_bytes,
               vmem_budget_bytes=12 * 1024 * 1024):
    """Pick (tile_rows, n_chunks): VMEM-budgeted, megacore-friendly, 8-row aligned."""
    per_row = (2 * (n_classes * _LANES * x_itemsize + t_row_bytes)   # double-buffered inputs
               + 6 * 4 * n_classes * _LANES)                         # ~6 f32 block temporaries
    ts_cap = max(8, min(512, (vmem_budget_bytes // per_row) // 8 * 8))
    # v7x megacore: aim for >= ~8 total grid steps so both TensorCores get work.
    want_chunks = max(1, _cdiv(8, batch))
    ts_mega = max(8, _round_up(_cdiv(rows_raw, want_chunks), 8))
    ts_desired = min(ts_cap, ts_mega)
    n_chunks = _cdiv(rows_raw, ts_desired)
    # Re-balance tile size to minimize padding; stays <= ts_desired and a multiple of 8.
    ts = _round_up(_cdiv(rows_raw, n_chunks), 8)
    return ts, n_chunks


def dice_bce_loss(inputs, targets, smooth=1e-5):
    """0.5 * CrossEntropy + 0.5 * sigmoid-Dice, matching TransUNet's DiceBCELoss.

    inputs:  (B, C, H, W) logits in any float dtype (bf16 halves HBM read traffic).
    targets: dense soft targets (B, C, H, W) (exact PyTorch semantics), OR integer class
             labels (B, H, W) for the one-hot case (reads ~C x fewer target bytes).
    """
    B, C, H, W = inputs.shape
    HW = H * W
    labels_mode = targets.ndim == 3
    if labels_mode:
        assert targets.shape == (B, H, W), "label targets must be (B, H, W)"
        assert jnp.issubdtype(targets.dtype, jnp.integer), "label targets must be ints"
        t_row_bytes = _LANES * targets.dtype.itemsize
    else:
        assert targets.shape == inputs.shape, "dense targets must match inputs shape"
        t_row_bytes = C * _LANES * targets.dtype.itemsize

    rows_raw = _cdiv(HW, _LANES)
    ts, n_chunks = _pick_tile(rows_raw, B, C, inputs.dtype.itemsize, t_row_bytes)
    rows = ts * n_chunks
    hw_pad = rows * _LANES - HW

    # Free, contiguous reshapes; padding (when needed) contributes exactly 0 everywhere:
    # logits padded with _NEG_PAD -> sigmoid == 0; targets padded with 0 / no-class label.
    x = inputs.reshape(B, C, HW)
    if hw_pad:
        x = jnp.pad(x, ((0, 0), (0, 0), (0, hw_pad)), constant_values=_NEG_PAD)
    x = x.reshape(B, C, rows, _LANES)
    x_spec = pl.BlockSpec((1, C, ts, _LANES), lambda b, i: (b, 0, i, 0))

    if labels_mode:
        t = targets.reshape(B, HW)
        if hw_pad:
            t = jnp.pad(t, ((0, 0), (0, hw_pad)), constant_values=C)  # matches no class
        t = t.reshape(B, rows, _LANES)
        t_spec = pl.BlockSpec((1, ts, _LANES), lambda b, i: (b, i, 0))
        kernel = _labels_kernel
    else:
        t = targets.reshape(B, C, HW)
        if hw_pad:
            t = jnp.pad(t, ((0, 0), (0, 0), (0, hw_pad)), constant_values=0)
        t = t.reshape(B, C, rows, _LANES)
        t_spec = pl.BlockSpec((1, C, ts, _LANES), lambda b, i: (b, 0, i, 0))
        kernel = _dense_kernel

    parts = pl.pallas_call(
        kernel,
        out_shape=jax.ShapeDtypeStruct((B, n_chunks, 4, C, _LANES), jnp.float32),
        grid_spec=pltpu.PrefetchScalarGridSpec(
            num_scalar_prefetch=0,
            grid=(B, n_chunks),
            in_specs=[x_spec, t_spec],
            out_specs=pl.BlockSpec((1, 1, 4, C, _LANES), lambda b, i: (b, i, 0, 0, 0)),
        ),
        compiler_params=pltpu.CompilerParams(
            dimension_semantics=("parallel", "parallel")),
    )(x, t)

    # Tiny final combine in JAX (per-block, per-class, lane-wide partials -> scalars).
    slab = jnp.sum(parts, axis=(0, 1, 4))                 # (4, C)
    ce = jnp.sum(slab[0]) / (B * HW)
    inter, ysum, zsum = slab[1], slab[2], slab[3]
    dice = jnp.mean(1.0 - (2.0 * inter + smooth) / (zsum + ysum + smooth))
    return 0.5 * ce + 0.5 * dice


def _reference(inputs, targets, smooth=1e-5):
    # Pure-JAX reference matching the PyTorch module semantics.
    logp = jax.nn.log_softmax(inputs, axis=1)
    ce = -jnp.mean(jnp.sum(targets * logp, axis=1))
    sig = jax.nn.sigmoid(inputs)
    C = inputs.shape[1]
    dice = 0.0
    for c in range(C):
        inter = jnp.sum(sig[:, c] * targets[:, c])
        y_sum = jnp.sum(targets[:, c] * targets[:, c])
        z_sum = jnp.sum(sig[:, c] * sig[:, c])
        dice = dice + (1.0 - (2.0 * inter + smooth) / (z_sum + y_sum + smooth))
    dice = dice / C
    return 0.5 * ce + 0.5 * dice


if __name__ == "__main__":
    B, C, H, W = 2, 4, 16, 16  # n_classes = 4
    key = jax.random.PRNGKey(0)
    k_logits, k_labels = jax.random.split(key)

    inputs = jax.random.normal(k_logits, (B, C, H, W), dtype=jnp.float32)
    labels = jax.random.randint(k_labels, (B, H, W), 0, C, dtype=jnp.int32)
    targets = jax.nn.one_hot(labels, C, axis=1, dtype=jnp.float32)

    # Path 1: dense soft targets (exact PyTorch module signature), f32 logits.
    out_dense = jax.block_until_ready(dice_bce_loss(inputs, targets))
    ref = jax.block_until_ready(_reference(inputs, targets))
    assert jnp.allclose(out_dense, ref, rtol=1e-5, atol=1e-5), (out_dense, ref)

    # Path 2: integer labels + native bf16 logits (the HBM-traffic-optimized path).
    inputs_bf16 = inputs.astype(jnp.bfloat16)
    out_labels = jax.block_until_ready(dice_bce_loss(inputs_bf16, labels))
    ref_bf16 = jax.block_until_ready(_reference(inputs_bf16.astype(jnp.float32), targets))
    assert jnp.allclose(out_labels, ref_bf16, rtol=1e-4, atol=1e-4), (out_labels, ref_bf16)

    print("KERNEL_OK")
</pallas_src>

<mosaic_0001>
module attributes {stable_mosaic.version = 11 : i64} {
  func.func @_dense_kernel(%arg0: i32, %arg1: i32, %arg2: memref<1x4x8x128xf32, #tpu.memory_space<vmem>>, %arg3: memref<1x4x8x128xf32, #tpu.memory_space<vmem>>, %arg4: memref<1x1x4x4x128xf32, #tpu.memory_space<vmem>>) attributes {dimension_semantics = [#tpu.dimension_semantics<parallel>, #tpu.dimension_semantics<parallel>], iteration_bounds = array<i64: 2, 1>, scalar_prefetch = 0 : i64, scratch_operands = 0 : i64, tpu.core_type = #tpu.core_type<tc>, window_params = [{transform_indices = @transform_0, window_bounds = array<i64: 1, 4, 8, 128>}, {transform_indices = @transform_1, window_bounds = array<i64: 1, 4, 8, 128>}, {transform_indices = @transform_2, window_bounds = array<i64: 1, 1, 4, 4, 128>}]} {
    %c0 = arith.constant 0 : index
    %c0_0 = arith.constant 0 : index
    %c0_1 = arith.constant 0 : index
    %c0_2 = arith.constant 0 : index
    %0 = vector.load %arg2[%c0, %c0_0, %c0_1, %c0_2] : memref<1x4x8x128xf32, #tpu.memory_space<vmem>>, vector<1x4x8x128xf32>
    %1 = vector.shape_cast %0 : vector<1x4x8x128xf32> to vector<4x8x128xf32>
    %c0_3 = arith.constant 0 : index
    %c0_4 = arith.constant 0 : index
    %c0_5 = arith.constant 0 : index
    %c0_6 = arith.constant 0 : index
    %2 = vector.load %arg3[%c0_3, %c0_4, %c0_5, %c0_6] : memref<1x4x8x128xf32, #tpu.memory_space<vmem>>, vector<1x4x8x128xf32>
    %3 = vector.shape_cast %2 : vector<1x4x8x128xf32> to vector<4x8x128xf32>
    %cst = arith.constant dense<0xFF800000> : vector<8x128xf32>
    %4 = vector.multi_reduction <maximumf>, %1, %cst [0] : vector<4x8x128xf32> to vector<8x128xf32>
    %5 = vector.shape_cast %4 : vector<8x128xf32> to vector<1x8x128xf32>
    %6 = vector.broadcast %5 : vector<1x8x128xf32> to vector<4x8x128xf32>
    %7 = arith.subf %1, %6 : vector<4x8x128xf32>
    %8 = math.exp %7 : vector<4x8x128xf32>
    %cst_7 = arith.constant dense<0.000000e+00> : vector<8x128xf32>
    %9 = vector.multi_reduction <add>, %8, %cst_7 [0] : vector<4x8x128xf32> to vector<8x128xf32>
    %10 = math.log %9 : vector<8x128xf32>
    %11 = arith.addf %4, %10 : vector<8x128xf32>
    %12 = arith.negf %1 : vector<4x8x128xf32>
    %13 = math.exp %12 : vector<4x8x128xf32>
    %cst_8 = arith.constant 1.000000e+00 : f32
    %14 = vector.broadcast %cst_8 : f32 to vector<4x8x128xf32>
    %15 = arith.addf %14, %13 : vector<4x8x128xf32>
    %16 = arith.divf %14, %15 : vector<4x8x128xf32>
    %17 = vector.shape_cast %11 : vector<8x128xf32> to vector<1x8x128xf32>
    %18 = vector.broadcast %17 : vector<1x8x128xf32> to vector<4x8x128xf32>
    %19 = arith.subf %18, %1 : vector<4x8x128xf32>
    %20 = arith.mulf %3, %19 : vector<4x8x128xf32>
    %cst_9 = arith.constant dense<0.000000e+00> : vector<4x128xf32>
    %21 = vector.multi_reduction <add>, %20, %cst_9 [1] : vector<4x8x128xf32> to vector<4x128xf32>
    %22 = arith.mulf %16, %3 : vector<4x8x128xf32>
    %cst_10 = arith.constant dense<0.000000e+00> : vector<4x128xf32>
    %23 = vector.multi_reduction <add>, %22, %cst_10 [1] : vector<4x8x128xf32> to vector<4x128xf32>
    %24 = arith.mulf %3, %3 : vector<4x8x128xf32>
    %cst_11 = arith.constant dense<0.000000e+00> : vector<4x128xf32>
    %25 = vector.multi_reduction <add>, %24, %cst_11 [1] : vector<4x8x128xf32> to vector<4x128xf32>
    %26 = arith.mulf %16, %16 : vector<4x8x128xf32>
    %cst_12 = arith.constant dense<0.000000e+00> : vector<4x128xf32>
    %27 = vector.multi_reduction <add>, %26, %cst_12 [1] : vector<4x8x128xf32> to vector<4x128xf32>
    %c0_13 = arith.constant 0 : index
    %c0_14 = arith.constant 0 : index
    %c0_15 = arith.constant 0 : index
    %c0_16 = arith.constant 0 : index
    %c0_17 = arith.constant 0 : index
    %28 = vector.load %arg4[%c0_13, %c0_14, %c0_15, %c0_16, %c0_17] : memref<1x1x4x4x128xf32, #tpu.memory_space<vmem>>, vector<1x1x1x4x128xf32>
    %29 = vector.shape_cast %28 : vector<1x1x1x4x128xf32> to vector<4x128xf32>
    %30 = vector.shape_cast %21 : vector<4x128xf32> to vector<1x1x1x4x128xf32>
    tpu.vector_store %arg4[%c0_13, %c0_14, %c0_15, %c0_16, %c0_17], %30 {strides = array<i32>} : memref<1x1x4x4x128xf32, #tpu.memory_space<vmem>>, vector<1x1x1x4x128xf32>,
    %c0_18 = arith.constant 0 : index
    %c0_19 = arith.constant 0 : index
    %c1 = arith.constant 1 : index
    %c0_20 = arith.constant 0 : index
    %c0_21 = arith.constant 0 : index
    %31 = vector.load %arg4[%c0_18, %c0_19, %c1, %c0_20, %c0_21] : memref<1x1x4x4x128xf32, #tpu.memory_space<vmem>>, vector<1x1x1x4x128xf32>
    %32 = vector.shape_cast %31 : vector<1x1x1x4x128xf32> to vector<4x128xf32>
    %33 = vector.shape_cast %23 : vector<4x128xf32> to vector<1x1x1x4x128xf32>
    tpu.vector_store %arg4[%c0_18, %c0_19, %c1, %c0_20, %c0_21], %33 {strides = array<i32>} : memref<1x1x4x4x128xf32, #tpu.memory_space<vmem>>, vector<1x1x1x4x128xf32>,
    %c0_22 = arith.constant 0 : index
    %c0_23 = arith.constant 0 : index
    %c2 = arith.constant 2 : index
    %c0_24 = arith.constant 0 : index
    %c0_25 = arith.constant 0 : index
    %34 = vector.load %arg4[%c0_22, %c0_23, %c2, %c0_24, %c0_25] : memref<1x1x4x4x128xf32, #tpu.memory_space<vmem>>, vector<1x1x1x4x128xf32>
    %35 = vector.shape_cast %34 : vector<1x1x1x4x128xf32> to vector<4x128xf32>
    %36 = vector.shape_cast %25 : vector<4x128xf32> to vector<1x1x1x4x128xf32>
    tpu.vector_store %arg4[%c0_22, %c0_23, %c2, %c0_24, %c0_25], %36 {strides = array<i32>} : memref<1x1x4x4x128xf32, #tpu.memory_space<vmem>>, vector<1x1x1x4x128xf32>,
    %c0_26 = arith.constant 0 : index
    %c0_27 = arith.constant 0 : index
    %c3 = arith.constant 3 : index
    %c0_28 = arith.constant 0 : index
    %c0_29 = arith.constant 0 : index
    %37 = vector.load %arg4[%c0_26, %c0_27, %c3, %c0_28, %c0_29] : memref<1x1x4x4x128xf32, #tpu.memory_space<vmem>>, vector<1x1x1x4x128xf32>
    %38 = vector.shape_cast %37 : vector<1x1x1x4x128xf32> to vector<4x128xf32>
    %39 = vector.shape_cast %27 : vector<4x128xf32> to vector<1x1x1x4x128xf32>
    tpu.vector_store %arg4[%c0_26, %c0_27, %c3, %c0_28, %c0_29], %39 {strides = array<i32>} : memref<1x1x4x4x128xf32, #tpu.memory_space<vmem>>, vector<1x1x1x4x128xf32>,
    return
  }
  func.func @transform_0(%arg0: i32, %arg1: i32) -> (i32, i32, i32, i32) {
    %c0_i32 = arith.constant 0 : i32
    %c0_i32_0 = arith.constant 0 : i32
    %c0_i32_1 = arith.constant 0 : i32
    return %arg0, %c0_i32, %arg1, %c0_i32_0 : i32, i32, i32, i32
  }
  func.func @transform_1(%arg0: i32, %arg1: i32) -> (i32, i32, i32, i32) {
    %c0_i32 = arith.constant 0 : i32
    %c0_i32_0 = arith.constant 0 : i32
    %c0_i32_1 = arith.constant 0 : i32
    return %arg0, %c0_i32, %arg1, %c0_i32_0 : i32, i32, i32, i32
  }
  func.func @transform_2(%arg0: i32, %arg1: i32) -> (i32, i32, i32, i32, i32) {
    %c0_i32 = arith.constant 0 : i32
    %c0_i32_0 = arith.constant 0 : i32
    %c0_i32_1 = arith.constant 0 : i32
    %c0_i32_2 = arith.constant 0 : i32
    return %arg0, %arg1, %c0_i32, %c0_i32_0, %c0_i32_1 : i32, i32, i32, i32, i32
  }
}

</mosaic_0001>

<llo_original>
// kernel: tpu_custom_call.1
$region0: #{tpu_custom_call.1}
  #allocation0 [shape = 'u32[]', space=smem, size = 0x4, offset = 0x4, fixed_abs, tag = 'smem constant byte address 0x4 - core index']
  #allocation1 [shape = 'u32[72,128]{1,0:T(1,128)}', space=vmem, size = 0x9000, scoped, tag = 'internal scratch']
  %s0 = inlined_call_operand.hbm [shape: f32[2,4,8,128], index: 0, kind: input, shape index: {}]
  %s1 = inlined_call_operand.hbm [shape: f32[2,4,8,128], index: 1, kind: input, shape index: {}]
  %s2 = inlined_call_operand.hbm [shape: f32[2,1,4,4,128], index: 2, kind: output, shape index: {}]
  %s3 = sld [smem:[#allocation0]]
  $region49: #{tpu_custom_call.1} parent=0
    _
  %s5 = ssub.s32 1, %s3
  %s6 = scalar_select 0, %s5, %s3
  $region1: #{tpu_custom_call.1} parent=0
    #allocation2 [shape = 'u8[32768]{0}', space=vmem, size = 0x8000, scoped, tag = 'input window, operand 0']
    #allocation3 [shape = 's32[2]{0}', space=sflag, size = 0x8, scoped, tag = 'scoped memory for tpu_custom_call.1']
    #allocation4 [shape = 's32[2]{0}', space=sflag, size = 0x8, scoped, tag = 'scoped memory for tpu_custom_call.1']
    #allocation5 [shape = 'u8[32768]{0}', space=vmem, size = 0x8000, scoped, tag = 'input window, operand 1']
    #allocation6 [shape = 's32[2]{0}', space=sflag, size = 0x8, scoped, tag = 'scoped memory for tpu_custom_call.1']
    #allocation7 [shape = 'u8[16384]{0}', space=vmem, size = 0x4000, scoped, tag = 'output window, operand 0']
    %7 = vsyncpa [#allocation3], 0
    %s8 = scalar_lea.sflag [#allocation3], 1
    %9 = vsyncpa %s8, 0
    %10 = vsyncpa [#allocation6], 0
    %s11 = scalar_lea.sflag [#allocation6], 1
    %12 = vsyncpa %s11, 0
    %13 = vsyncpa [#allocation4], 0
    %s14 = scalar_lea.sflag [#allocation4], 1
    %15 = vsyncpa %s14, 0
    loop: start=0, step=1, limit=4
    $region2: #{tpu_custom_call.1} parent=1 // loop_pre_header
      _
    $region3: #{tpu_custom_call.1} parent=1 // loop_header
      %s17 = sphi 0, %s21
      %p18 = scmp.ge.s32.totalorder %s17, 4
      %s24 = sphi 0, %s36
      %s25 = sphi 0, %s32
      %s26 = sphi 0, %s24
      %s27 = sphi 0, %s25
      %s28 = sphi 0, %s26
      %s29 = sphi 0, %s27
      %s41 = sphi 0, %s43
      %s44 = sphi 0, %s41
      %s45 = sphi 0, %s44
      %s61 = sphi 0, %s45
      %s69 = sphi 0, %s71
      %s72 = sphi 0, %s69
      %s73 = sphi 0, %s72
      %s89 = sphi 0, %s73
      %s97 = sphi 0, %s99
      %s100 = sphi 0, %s97
      %s101 = sphi 0, %s100
      %s117 = sphi 0, %s101
    $region4: #{tpu_custom_call.1} parent=1 // loop_header_branch
      %20 = sbr.rel (%p18) target = $region8
    $region5: #{tpu_custom_call.1} parent=1 // loop_body
      %s22 = ssub.s32 %s17, 1
      %s23 = ssub.s32 %s17, 2
      %s30 = sadd.s32 1, %s25
      %p31 = scmp.ge.s32.totalorder %s30, 1
      %s32 = scalar_select %p31, 0, %s30
      %s33 = sadd.s32 1, %s24
      %s34 = scalar_select %p31, %s33, %s24
      %p35 = scmp.ge.s32.totalorder %s34, 2
      %s36 = scalar_select %p35, 0, %s34
      %s37 = ssub.s32 %s24, %s36
      %s38 = ssub.s32 %s25, %s32
      %s39 = sor.u32 %s37, %s38
      %p40 = scmp.eq.s32.totalorder %s39, 0
      %s42 = sadd.s32 %s41, 1
      %s43 = scalar_select %p40, %s41, %s42
      %p46 = pneg %p40
      %p47 = scmp.eq.s32.totalorder %s17, 1
      %p48 = por %p46, %p47
      %p49 = scmp.ne.s32.totalorder %s41, %s44
      %p50 = scmp.eq.s32.totalorder %s17, 0
      %p51 = por %p49, %p50
      %p52 = scmp.ne.s32.totalorder %s41, %s44
      %p53 = scmp.eq.s32.totalorder %s22, 1
      %p54 = por %p52, %p53
      %p55 = scmp.ne.s32.totalorder %s44, %s45
      %p56 = scmp.eq.s32.totalorder %s22, 0
      %p57 = por %p55, %p56
      %p58 = scmp.ne.s32.totalorder %s44, %s45
      %p59 = scmp.eq.s32.totalorder %s23, 1
      %p60 = por %p58, %p59
      %p62 = scmp.ne.s32.totalorder %s45, %s61
      %p63 = scmp.eq.s32.totalorder %s23, 0
      %p64 = por %p62, %p63
      %s65 = ssub.s32 %s24, %s36
      %s66 = ssub.s32 %s25, %s32
      %s67 = sor.u32 %s65, %s66
      %p68 = scmp.eq.s32.totalorder %s67, 0
      %s70 = sadd.s32 %s69, 1
      %s71 = scalar_select %p68, %s69, %s70
      %p74 = pneg %p68
      %p75 = scmp.eq.s32.totalorder %s17, 1
      %p76 = por %p74, %p75
      %p77 = scmp.ne.s32.totalorder %s69, %s72
      %p78 = scmp.eq.s32.totalorder %s17, 0
      %p79 = por %p77, %p78
      %p80 = scmp.ne.s32.totalorder %s69, %s72
      %p81 = scmp.eq.s32.totalorder %s22, 1
      %p82 = por %p80, %p81
      %p83 = scmp.ne.s32.totalorder %s72, %s73
      %p84 = scmp.eq.s32.totalorder %s22, 0
      %p85 = por %p83, %p84
      %p86 = scmp.ne.s32.totalorder %s72, %s73
      %p87 = scmp.eq.s32.totalorder %s23, 1
      %p88 = por %p86, %p87
      %p90 = scmp.ne.s32.totalorder %s73, %s89
      %p91 = scmp.eq.s32.totalorder %s23, 0
      %p92 = por %p90, %p91
      %s93 = ssub.s32 %s24, %s36
      %s94 = ssub.s32 %s25, %s32
      %s95 = sor.u32 %s93, %s94
      %p96 = scmp.eq.s32.totalorder %s95, 0
      %s98 = sadd.s32 %s97, 1
      %s99 = scalar_select %p96, %s97, %s98
      %p102 = pneg %p96
      %p103 = scmp.eq.s32.totalorder %s17, 1
      %p104 = por %p102, %p103
      %p105 = scmp.ne.s32.totalorder %s97, %s100
      %p106 = scmp.eq.s32.totalorder %s17, 0
      %p107 = por %p105, %p106
      %p108 = scmp.ne.s32.totalorder %s97, %s100
      %p109 = scmp.eq.s32.totalorder %s22, 1
      %p110 = por %p108, %p109
      %p111 = scmp.ne.s32.totalorder %s100, %s101
      %p112 = scmp.eq.s32.totalorder %s22, 0
      %p113 = por %p111, %p112
      %p114 = scmp.ne.s32.totalorder %s100, %s101
      %p115 = scmp.eq.s32.totalorder %s23, 1
      %p116 = por %p114, %p115
      %p118 = scmp.ne.s32.totalorder %s101, %s117
      %p119 = scmp.eq.s32.totalorder %s23, 0
      %p120 = por %p118, %p119
      %p121 = scmp.le.s32.totalorder 1, %s17
      %p122 = scmp.lt.s32.totalorder %s17, 3
      %p123 = pnand %p121, %p122
      %p124 = pneg %p123
      // Predicated region
      $region9: #{tpu_custom_call.1} parent=5 // pred_check
        _
      $region10: #{tpu_custom_call.1} parent=5 // pred_check_branch
        %126 = sbr.rel (%p123) target = $region12
      $region11: #{tpu_custom_call.1} parent=5 // pred_region
        %s127 = ssub.s32 %s17, 1
      $region12: #{tpu_custom_call.1} parent=5 // pred_fallthru
        _
      %p128 = scmp.lt.s32.totalorder %s17, 2
      // Predicated region
      $region13: #{tpu_custom_call.1} parent=5 // pred_check
        %p129 = pneg %p128
      $region14: #{tpu_custom_call.1} parent=5 // pred_check_branch
        %131 = sbr.rel (%p129) target = $region16
      $region15: #{tpu_custom_call.1} parent=5 // pred_region
        // Predicated region
        $region17: #{tpu_custom_call.1} parent=15 // pred_check
          %p132 = pneg %p51
        $region18: #{tpu_custom_call.1} parent=15 // pred_check_branch
          %134 = sbr.rel (%p132) target = $region20
        $region19: #{tpu_custom_call.1} parent=15 // pred_region
          %s135 = sand.u32 %s41, 1
          %s136 = scalar_lea.sflag [#allocation3], %s135
          %s137 = sand.u32 %s41, 1
          %s138 = smul.addr %s137, 32
          %s139 = scalar_lea.vmem [#allocation2], %s138
          %141 = vsyncadd %s136, 0
          %s142 = smul.addr %s24, 4
          %s143 = sadd.s32 %s25, %s142
          %s144 = smul.addr %s143, 8
          %s145 = scalar_lea.hbm %s0, %s144
          %s146 = sshll.u32 %s145, 4
          %s147 = int_to_ptr.hbm [resolvable:$true] %s146
          %s148 = sshll.u32 %s139, 4
          %s149 = int_to_ptr.vmem [resolvable:$true] %s148
          %154 = dma.hbm_to_vmem [thread:$0]  %s147, 512, %s149, %s136, 128, 128, 8
        $region20: #{tpu_custom_call.1} parent=15 // pred_fallthru
          _
        // Predicated region
        $region21: #{tpu_custom_call.1} parent=15 // pred_check
          %p155 = pneg %p79
        $region22: #{tpu_custom_call.1} parent=15 // pred_check_branch
          %157 = sbr.rel (%p155) target = $region24
        $region23: #{tpu_custom_call.1} parent=15 // pred_region
          %s158 = sand.u32 %s69, 1
          %s159 = scalar_lea.sflag [#allocation6], %s158
          %s160 = sand.u32 %s69, 1
          %s161 = smul.addr %s160, 32
          %s162 = scalar_lea.vmem [#allocation5], %s161
          %164 = vsyncadd %s159, 0
          %s165 = smul.addr %s24, 4
          %s166 = sadd.s32 %s25, %s165
          %s167 = smul.addr %s166, 8
          %s168 = scalar_lea.hbm %s1, %s167
          %s169 = sshll.u32 %s168, 4
          %s170 = int_to_ptr.hbm [resolvable:$true] %s169
          %s171 = sshll.u32 %s162, 4
          %s172 = int_to_ptr.vmem [resolvable:$true] %s171
          %177 = dma.hbm_to_vmem [thread:$0]  %s170, 512, %s172, %s159, 128, 128, 8
        $region24: #{tpu_custom_call.1} parent=15 // pred_fallthru
          _
      $region16: #{tpu_custom_call.1} parent=5 // pred_fallthru
        _
      %p178 = scmp.le.s32.totalorder 1, %s17
      %p179 = scmp.lt.s32.totalorder %s17, 3
      %p180 = pnand %p178, %p179
      %p181 = pneg %p180
      // Predicated region
      $region25: #{tpu_custom_call.1} parent=5 // pred_check
        _
      $region26: #{tpu_custom_call.1} parent=5 // pred_check_branch
        %183 = sbr.rel (%p180) target = $region28
      $region27: #{tpu_custom_call.1} parent=5 // pred_region
        %s184 = ssub.s32 %s17, 1
        %s185 = sand.u32 %s44, 1
        %s186 = scalar_lea.sflag [#allocation3], %s185
        %s187 = sand.u32 %s44, 1
        %s188 = smul.addr %s187, 32
        %s189 = scalar_lea.vmem [#allocation2], %s188
        // Predicated region
        $region29: #{tpu_custom_call.1} parent=27 // pred_check
          %p190 = pneg %p57
        $region30: #{tpu_custom_call.1} parent=27 // pred_check_branch
          %192 = sbr.rel (%p190) target = $region32
        $region31: #{tpu_custom_call.1} parent=27 // pred_region
          %194 = dma.done %s186, 512
        $region32: #{tpu_custom_call.1} parent=27 // pred_fallthru
          _
        %s195 = sand.u32 %s72, 1
        %s196 = scalar_lea.sflag [#allocation6], %s195
        %s197 = sand.u32 %s72, 1
        %s198 = smul.addr %s197, 32
        %s199 = scalar_lea.vmem [#allocation5], %s198
        // Predicated region
        $region33: #{tpu_custom_call.1} parent=27 // pred_check
          %p200 = pneg %p85
        $region34: #{tpu_custom_call.1} parent=27 // pred_check_branch
          %202 = sbr.rel (%p200) target = $region36
        $region35: #{tpu_custom_call.1} parent=27 // pred_region
          %204 = dma.done %s196, 512
        $region36: #{tpu_custom_call.1} parent=27 // pred_fallthru
          _
        %s205 = sand.u32 %s44, 1
        %s206 = scalar_lea.sflag [#allocation3], %s205
        %s207 = sand.u32 %s44, 1
        %s208 = smul.addr %s207, 32
        %s209 = scalar_lea.vmem [#allocation2], %s208
        %p210 = pneg %p57
        %p211 = pneg %p54
        %s212 = sand.u32 %s72, 1
        %s213 = scalar_lea.sflag [#allocation6], %s212
        %s214 = sand.u32 %s72, 1
        %s215 = smul.addr %s214, 32
        %s216 = scalar_lea.vmem [#allocation5], %s215
        %p217 = pneg %p85
        %p218 = pneg %p82
        %p219 = pneg %p113
        %p220 = pneg %p110
        %s221 = sand.u32 %s100, 1
        %s222 = scalar_lea.sflag [#allocation4], %s221
        %s223 = sand.u32 %s100, 1
        %s224 = smul.addr %s223, 16
        %s225 = scalar_lea.vmem [#allocation7], %s224
        %v226 = vld [vmem:[%s189] sm:$0xff]
        %v227 = vld [vmem:[%s189 + $0x8] sm:$0xff]
        %v228 = vld [vmem:[%s189 + $0x10] sm:$0xff]
        %v229 = vld [vmem:[%s189 + $0x18] sm:$0xff]
        %v230 = vld [vmem:[%s199] sm:$0xff]
        %v231 = vld [vmem:[%s199 + $0x8] sm:$0xff]
        %v232 = vld [vmem:[%s199 + $0x10] sm:$0xff]
        %v233 = vld [vmem:[%s199 + $0x18] sm:$0xff]
        %v234 = vmax.f32 %v226, %v227
        %v235 = vmax.f32 %v228, %v229
        %v236 = vmax.f32 %v234, %v235
        %v237 = vsub.f32 %v226, %v236
        %v238 = vsub.f32 %v227, %v236
        %v239 = vsub.f32 %v228, %v236
        %v240 = vsub.f32 %v229, %v236
        %v241 = vmul.f32 %v237, 1.442695
        %v242 = vpow.pop %v241
        %v243 = vmul.f32 %v238, 1.442695
        %v244 = vpow.pop %v243
        %v245 = vmul.f32 %v239, 1.442695
        %v246 = vpow.pop %v245
        %v247 = vmul.f32 %v240, 1.442695
        %v248 = vpow.pop %v247
        %v249 = vadd.f32 %v242, %v244
        %v250 = vadd.f32 %v249, %v246
        %v251 = vadd.f32 %v250, %v248
        %v252 = vlog2.pop %v251
        %v253 = vmul.f32 %v252, 0.6931472
        %v254 = vadd.f32 %v236, %v253
        %v255 = vxor.u32 %v226, 2147483648
        %v256 = vxor.u32 %v227, 2147483648
        %v257 = vxor.u32 %v228, 2147483648
        %v258 = vxor.u32 %v229, 2147483648
        %v259 = vmul.f32 %v255, 1.442695
        %v260 = vpow.pop %v259
        %v261 = vmul.f32 %v256, 1.442695
        %v262 = vpow.pop %v261
        %v263 = vmul.f32 %v257, 1.442695
        %v264 = vpow.pop %v263
        %v265 = vmul.f32 %v258, 1.442695
        %v266 = vpow.pop %v265
        %v267 = vadd.f32 %v260, 1.0
        %v268 = vadd.f32 %v262, 1.0
        %v269 = vadd.f32 %v264, 1.0
        %v270 = vadd.f32 %v266, 1.0
        %v271 = vrcp.pop %v267
        %v272 = vmul.f32 %v267, %v271
        %v273 = vsub.f32 1.0, %v272
        %v274 = vmul.f32 %v271, %v273
        %v275 = vadd.f32 %v271, %v274
        %vm276 = vweird.f32 %v267
        %vm277 = vweird.f32 %v271
        %vm278 = vmor %vm276, %vm277
        %v279 = vsel %vm278, %v271, %v275
        %v280 = vand.u32 2147483647, %v267
        %vm281 = vcmp.eq.f32.partialorder %v280, 8.507059e+37
        %v282 = vand.u32 %v267, 2147483648
        %v283 = vor.u32 1.1754944e-38, %v282
        %v284 = vsel %vm281, %v283, %v279
        %v285 = vmul.f32 1.0, %v284
        %v286 = vrcp.pop %v268
        %v287 = vmul.f32 %v268, %v286
        %v288 = vsub.f32 1.0, %v287
        %v289 = vmul.f32 %v286, %v288
        %v290 = vadd.f32 %v286, %v289
        %vm291 = vweird.f32 %v268
        %vm292 = vweird.f32 %v286
        %vm293 = vmor %vm291, %vm292
        %v294 = vsel %vm293, %v286, %v290
        %v295 = vand.u32 2147483647, %v268
        %vm296 = vcmp.eq.f32.partialorder %v295, 8.507059e+37
        %v297 = vand.u32 %v268, 2147483648
        %v298 = vor.u32 1.1754944e-38, %v297
        %v299 = vsel %vm296, %v298, %v294
        %v300 = vmul.f32 1.0, %v299
        %v301 = vrcp.pop %v269
        %v302 = vmul.f32 %v269, %v301
        %v303 = vsub.f32 1.0, %v302
        %v304 = vmul.f32 %v301, %v303
        %v305 = vadd.f32 %v301, %v304
        %vm306 = vweird.f32 %v269
        %vm307 = vweird.f32 %v301
        %vm308 = vmor %vm306, %vm307
        %v309 = vsel %vm308, %v301, %v305
        %v310 = vand.u32 2147483647, %v269
        %vm311 = vcmp.eq.f32.partialorder %v310, 8.507059e+37
        %v312 = vand.u32 %v269, 2147483648
        %v313 = vor.u32 1.1754944e-38, %v312
        %v314 = vsel %vm311, %v313, %v309
        %v315 = vmul.f32 1.0, %v314
        %v316 = vrcp.pop %v270
        %v317 = vmul.f32 %v270, %v316
        %v318 = vsub.f32 1.0, %v317
        %v319 = vmul.f32 %v316, %v318
        %v320 = vadd.f32 %v316, %v319
        %vm321 = vweird.f32 %v270
        %vm322 = vweird.f32 %v316
        %vm323 = vmor %vm321, %vm322
        %v324 = vsel %vm323, %v316, %v320
        %v325 = vand.u32 2147483647, %v270
        %vm326 = vcmp.eq.f32.partialorder %v325, 8.507059e+37
        %v327 = vand.u32 %v270, 2147483648
        %v328 = vor.u32 1.1754944e-38, %v327
        %v329 = vsel %vm326, %v328, %v324
        %v330 = vmul.f32 1.0, %v329
        %v331 = vsub.f32 %v254, %v226
        %v332 = vsub.f32 %v254, %v227
        %v333 = vsub.f32 %v254, %v228
        %v334 = vsub.f32 %v254, %v229
        %v335 = vmul.f32 %v230, %v331
        %v336 = vmul.f32 %v231, %v332
        %v337 = vmul.f32 %v232, %v333
        %v338 = vmul.f32 %v233, %v334
        %v339 = vrot.slane %v335, 4
        %v340 = vadd.f32 %v335, %v339
        %v341 = vrot.slane %v340, 2
        %v342 = vadd.f32 %v340, %v341
        %v343 = vrot.slane %v342, 1
        %v344 = vadd.f32 %v342, %v343
        %v345 = vrot.slane %v336, 4
        %v346 = vadd.f32 %v336, %v345
        %v347 = vrot.slane %v346, 2
        %v348 = vadd.f32 %v346, %v347
        %v349 = vrot.slane %v348, 1
        %v350 = vadd.f32 %v348, %v349
        %v351 = vrot.slane %v337, 4
        %v352 = vadd.f32 %v337, %v351
        %v353 = vrot.slane %v352, 2
        %v354 = vadd.f32 %v352, %v353
        %v355 = vrot.slane %v354, 1
        %v356 = vadd.f32 %v354, %v355
        %v357 = vrot.slane %v338, 4
        %v358 = vadd.f32 %v338, %v357
        %v359 = vrot.slane %v358, 2
        %v360 = vadd.f32 %v358, %v359
        %v361 = vrot.slane %v360, 1
        %v362 = vadd.f32 %v360, %v361
        %v363 = vmul.f32 %v285, %v230
        %v364 = vmul.f32 %v300, %v231
        %v365 = vmul.f32 %v315, %v232
        %v366 = vmul.f32 %v330, %v233
        %v367 = vrot.slane %v363, 4
        %v368 = vadd.f32 %v363, %v367
        %v369 = vrot.slane %v368, 2
        %v370 = vadd.f32 %v368, %v369
        %v371 = vrot.slane %v370, 1
        %v372 = vadd.f32 %v370, %v371
        %v373 = vrot.slane %v364, 4
        %v374 = vadd.f32 %v364, %v373
        %v375 = vrot.slane %v374, 2
        %v376 = vadd.f32 %v374, %v375
        %v377 = vrot.slane %v376, 1
        %v378 = vadd.f32 %v376, %v377
        %v379 = vrot.slane %v365, 4
        %v380 = vadd.f32 %v365, %v379
        %v381 = vrot.slane %v380, 2
        %v382 = vadd.f32 %v380, %v381
        %v383 = vrot.slane %v382, 1
        %v384 = vadd.f32 %v382, %v383
        %v385 = vrot.slane %v366, 4
        %v386 = vadd.f32 %v366, %v385
        %v387 = vrot.slane %v386, 2
        %v388 = vadd.f32 %v386, %v387
        %v389 = vrot.slane %v388, 1
        %v390 = vadd.f32 %v388, %v389
        %v391 = vmul.f32 %v230, %v230
        %v392 = vmul.f32 %v231, %v231
        %v393 = vmul.f32 %v232, %v232
        %v394 = vmul.f32 %v233, %v233
        %v395 = vrot.slane %v391, 4
        %v396 = vadd.f32 %v391, %v395
        %v397 = vrot.slane %v396, 2
        %v398 = vadd.f32 %v396, %v397
        %v399 = vrot.slane %v398, 1
        %v400 = vadd.f32 %v398, %v399
        %v401 = vrot.slane %v392, 4
        %v402 = vadd.f32 %v392, %v401
        %v403 = vrot.slane %v402, 2
        %v404 = vadd.f32 %v402, %v403
        %v405 = vrot.slane %v404, 1
        %v406 = vadd.f32 %v404, %v405
        %v407 = vrot.slane %v393, 4
        %v408 = vadd.f32 %v393, %v407
        %v409 = vrot.slane %v408, 2
        %v410 = vadd.f32 %v408, %v409
        %v411 = vrot.slane %v410, 1
        %v412 = vadd.f32 %v410, %v411
        %v413 = vrot.slane %v394, 4
        %v414 = vadd.f32 %v394, %v413
        %v415 = vrot.slane %v414, 2
        %v416 = vadd.f32 %v414, %v415
        %v417 = vrot.slane %v416, 1
        %v418 = vadd.f32 %v416, %v417
        %v419 = vmul.f32 %v285, %v285
        %v420 = vmul.f32 %v300, %v300
        %v421 = vmul.f32 %v315, %v315
        %v422 = vmul.f32 %v330, %v330
        %v423 = vrot.slane %v419, 4
        %v424 = vadd.f32 %v419, %v423
        %v425 = vrot.slane %v424, 2
        %v426 = vadd.f32 %v424, %v425
        %v427 = vrot.slane %v426, 1
        %v428 = vadd.f32 %v426, %v427
        %v429 = vrot.slane %v420, 4
        %v430 = vadd.f32 %v420, %v429
        %v431 = vrot.slane %v430, 2
        %v432 = vadd.f32 %v430, %v431
        %v433 = vrot.slane %v432, 1
        %v434 = vadd.f32 %v432, %v433
        %v435 = vrot.slane %v421, 4
        %v436 = vadd.f32 %v421, %v435
        %v437 = vrot.slane %v436, 2
        %v438 = vadd.f32 %v436, %v437
        %v439 = vrot.slane %v438, 1
        %v440 = vadd.f32 %v438, %v439
        %v441 = vrot.slane %v422, 4
        %v442 = vadd.f32 %v422, %v441
        %v443 = vrot.slane %v442, 2
        %v444 = vadd.f32 %v442, %v443
        %v445 = vrot.slane %v444, 1
        %v446 = vadd.f32 %v444, %v445
        %vm451 = vcmask 1041409
        %v452 = vsel %vm451, %v350, %v344
        %vm453 = vcmask 1042434
        %v454 = vsel %vm453, %v356, %v452
        %vm455 = vcmask 1043459
        %v456 = vsel %vm455, %v362, %v454
        %458 = vst [vmem:[%s225] sm:$0xf] %v456
        %v463 = vsel %vm451, %v378, %v372
        %v464 = vsel %vm453, %v384, %v463
        %v465 = vsel %vm455, %v390, %v464
        %s467 = scalar_lea.vmem %s225, 4 [#allocation7]
        %468 = vst [vmem:[%s467] sm:$0xf] %v465
        %v473 = vsel %vm451, %v406, %v400
        %v474 = vsel %vm453, %v412, %v473
        %v475 = vsel %vm455, %v418, %v474
        %s477 = scalar_lea.vmem %s225, 8 [#allocation7]
        %478 = vst [vmem:[%s477] sm:$0xf] %v475
        %v483 = vsel %vm451, %v434, %v428
        %v484 = vsel %vm453, %v440, %v483
        %v485 = vsel %vm455, %v446, %v484
        %s487 = scalar_lea.vmem %s225, 12 [#allocation7]
        %488 = vst [vmem:[%s487] sm:$0xf] %v485
        %s489 = sand.u32 %s100, 1
        %s490 = scalar_lea.sflag [#allocation4], %s489
        %s491 = sand.u32 %s100, 1
        %s492 = smul.addr %s491, 16
        %s493 = scalar_lea.vmem [#allocation7], %s492
        // Predicated region
        $region37: #{tpu_custom_call.1} parent=27 // pred_check
          %p494 = pneg %p110
        $region38: #{tpu_custom_call.1} parent=27 // pred_check_branch
          %496 = sbr.rel (%p494) target = $region40
        $region39: #{tpu_custom_call.1} parent=27 // pred_region
          %498 = vsyncadd %s490, 0
          %s499 = smul.addr %s27, 4
          %s500 = smul.addr %s26, 4
          %s501 = sadd.s32 %s499, %s500
          %s502 = smul.addr %s501, 4
          %s503 = scalar_lea.hbm %s2, %s502
          %s504 = sshll.u32 %s493, 4
          %s505 = int_to_ptr.vmem [resolvable:$true] %s504
          %s506 = sshll.u32 %s503, 4
          %s507 = int_to_ptr.hbm [resolvable:$true] %s506
          %512 = dma.vmem_to_hbm [thread:$0]  %s505, 256, %s507, %s490, 64, 64, 4
        $region40: #{tpu_custom_call.1} parent=27 // pred_fallthru
          _
      $region28: #{tpu_custom_call.1} parent=5 // pred_fallthru
        _
      %p513 = scmp.le.s32.totalorder 2, %s17
      // Predicated region
      $region41: #{tpu_custom_call.1} parent=5 // pred_check
        %p514 = pneg %p513
      $region42: #{tpu_custom_call.1} parent=5 // pred_check_branch
        %516 = sbr.rel (%p514) target = $region44
      $region43: #{tpu_custom_call.1} parent=5 // pred_region
        %s517 = ssub.s32 %s17, 2
        // Predicated region
        $region45: #{tpu_custom_call.1} parent=43 // pred_check
          %p518 = pneg %p116
        $region46: #{tpu_custom_call.1} parent=43 // pred_check_branch
          %520 = sbr.rel (%p518) target = $region48
        $region47: #{tpu_custom_call.1} parent=43 // pred_region
          %s521 = sand.u32 %s101, 1
          %s522 = scalar_lea.sflag [#allocation4], %s521
          %s523 = sand.u32 %s101, 1
          %s524 = smul.addr %s523, 16
          %s525 = scalar_lea.vmem [#allocation7], %s524
          %527 = dma.done %s522, 256
        $region48: #{tpu_custom_call.1} parent=43 // pred_fallthru
          _
      $region44: #{tpu_custom_call.1} parent=5 // pred_fallthru
        _
    $region6: #{tpu_custom_call.1} parent=1 // loop_footer
      %s21 = sadd.s32 1, %s17
    $region7: #{tpu_custom_call.1} parent=1 // loop_footer_branch
      %16 = sbr.rel target = $region3
    $region8: #{tpu_custom_call.1} parent=1 // loop_exit
      _
    %528 = vsyncpa [#allocation3], 1
    %s529 = scalar_lea.sflag [#allocation3], 1
    %530 = vsyncpa %s529, 1
    %531 = vsyncpa [#allocation6], 1
    %s532 = scalar_lea.sflag [#allocation6], 1
    %533 = vsyncpa %s532, 1
    %534 = vsyncpa [#allocation4], 1
    %s535 = scalar_lea.sflag [#allocation4], 1
    %536 = vsyncpa %s535, 1

</llo_original>
